<compile_context>
chip_gen: v7x
topology: tpu7x:2x2x1
jax: 0.10.0
libtpu: 0.0.40
codegen_flags: <defaults>
</compile_context>

<pallas_src>
import functools

import numpy as np
import jax
import jax.numpy as jnp
from jax.experimental import pallas as pl
from jax.experimental.pallas import tpu as pltpu


def _round_up(x: int, m: int) -> int:
    return ((x + m - 1) // m) * m


def _embed_kernel(x_ref, w_ref, *rest, is_index: bool, apply_dropout: bool):
    """One row-tile of the embedding.

    x_ref : (tile_rows, 1) int32 indices      (is_index=True)
            (tile_rows, num_actions) float32  (is_index=False)
    w_ref : (num_actions, embed_pad) float32  -- resident across the grid
    rest  : [mask_ref,] o_ref  where mask_ref is (tile_rows, embed_pad) f32
    """
    if apply_dropout:
        mask_ref, o_ref = rest
    else:
        (o_ref,) = rest

    w = w_ref[...]
    if is_index:
        tile_rows = x_ref.shape[0]
        num_actions = w.shape[0]
        iota = jax.lax.broadcasted_iota(jnp.int32, (tile_rows, num_actions), 1)
        x = (iota == x_ref[...]).astype(w.dtype)   # embedding lookup == one-hot matmul
    else:
        x = x_ref[...]

    emb = jnp.dot(x, w, preferred_element_type=jnp.float32)
    if apply_dropout:
        emb = emb * mask_ref[...]                  # inverted-dropout scale mask
    o_ref[...] = emb.astype(o_ref.dtype)


class ActionEmbedder:
    """JAX/Pallas port of the PyTorch ActionEmbedder (forward pass)."""

    def __init__(self, num_actions: int, embed_dim: int, dropout_p: float = 0.0,
                 key=None, row_block: int = 512):
        self.num_actions = num_actions
        self.embed_dim = embed_dim
        self.dropout_p = float(dropout_p)
        self.row_block = row_block
        if key is None:
            key = jax.random.PRNGKey(0)
        # nn.init.normal_(weight, mean=0, std=1/sqrt(embed_dim))
        self.weight = (
            jax.random.normal(key, (num_actions, embed_dim), dtype=jnp.float32)
            / (embed_dim ** 0.5)
        )
        # Lane-dense padded weight: pad the N dim to a multiple of 128 once so
        # the output tile / stores are full 128-lane (no masked partial stores).
        self._embed_pad = _round_up(embed_dim, 128)
        self._weight_padded = (
            jnp.zeros((num_actions, self._embed_pad), jnp.float32)
            .at[:, :embed_dim].set(self.weight)
        )

    # ---------------------------------------------------------------- kernel
    def _run(self, x_flat, is_index: bool, mask):
        rows = x_flat.shape[0]
        tile = min(self.row_block, _round_up(rows, 8))      # multiple of 8
        rows_padded = _round_up(rows, tile)
        pad = rows_padded - rows
        if pad:
            x_flat = jnp.pad(x_flat, ((0, pad), (0, 0)))     # 0 is a valid index
        grid = (rows_padded // tile,)

        in_specs = [
            # row-tiled input (indices or one-hot rows)
            pl.BlockSpec((tile, x_flat.shape[1]), lambda i: (i, 0)),
            # weight: constant index_map -> stays VMEM-resident across the grid
            pl.BlockSpec((self.num_actions, self._embed_pad), lambda i: (0, 0)),
        ]
        args = [x_flat, self._weight_padded]

        apply_dropout = mask is not None
        if apply_dropout:
            if pad:
                mask = jnp.pad(mask, ((0, pad), (0, 0)))
            in_specs.append(pl.BlockSpec((tile, self._embed_pad), lambda i: (i, 0)))
            args.append(mask)

        kernel = functools.partial(
            _embed_kernel, is_index=is_index, apply_dropout=apply_dropout)

        out = pl.pallas_call(
            kernel,
            grid=grid,
            in_specs=in_specs,
            out_specs=pl.BlockSpec((tile, self._embed_pad), lambda i: (i, 0)),
            out_shape=jax.ShapeDtypeStruct((rows_padded, self._embed_pad),
                                           jnp.float32),
            compiler_params=pltpu.CompilerParams(
                dimension_semantics=("parallel",)),
        )(*args)
        return out[:rows, :self.embed_dim]

    # --------------------------------------------------------------- forward
    def __call__(self, actions, *, training: bool = False, key=None):
        apply_dropout = training and self.dropout_p > 0.0

        if jnp.issubdtype(actions.dtype, jnp.integer):
            lead_shape = actions.shape                        # (B,) or (B, S)
            x_flat = actions.reshape(-1, 1).astype(jnp.int32)
            is_index = True
        else:
            lead_shape = actions.shape[:-1]                   # (B,) or (B, S)
            x_flat = actions.reshape(-1, self.num_actions).astype(jnp.float32)
            is_index = False

        mask = None
        if apply_dropout:
            if key is None:
                key = jax.random.PRNGKey(0)
            keep = jax.random.bernoulli(
                key, 1.0 - self.dropout_p, (x_flat.shape[0], self._embed_pad))
            mask = keep.astype(jnp.float32) / (1.0 - self.dropout_p)

        out_flat = self._run(x_flat, is_index, mask)
        return out_flat.reshape(*lead_shape, self.embed_dim)


if __name__ == "__main__":
    key = jax.random.PRNGKey(0)
    k_w, k_idx, k_do = jax.random.split(key, 3)

    num_actions, embed_dim = 10, 32
    batch, seq = 2, 8

    embedder = ActionEmbedder(num_actions, embed_dim, dropout_p=0.0, key=k_w)

    # --- integer-index path: (batch, seq) int32 ---
    idx = jax.random.randint(k_idx, (batch, seq), 0, num_actions, dtype=jnp.int32)
    out_idx = embedder(idx)
    jax.block_until_ready(out_idx)
    ref_idx = jnp.take(embedder.weight, idx, axis=0)
    np.testing.assert_allclose(np.asarray(out_idx), np.asarray(ref_idx),
                               rtol=1e-5, atol=1e-5)
    assert out_idx.shape == (batch, seq, embed_dim)

    # --- integer-index path: 1-D (batch,) ---
    idx1 = idx[0]
    out_idx1 = embedder(idx1)
    jax.block_until_ready(out_idx1)
    np.testing.assert_allclose(
        np.asarray(out_idx1),
        np.asarray(jnp.take(embedder.weight, idx1, axis=0)),
        rtol=1e-5, atol=1e-5)
    assert out_idx1.shape == (seq, embed_dim)

    # --- one-hot path: (batch, seq, num_actions) float32 ---
    one_hot = jax.nn.one_hot(idx, num_actions, dtype=jnp.float32)
    out_oh = embedder(one_hot)
    jax.block_until_ready(out_oh)
    ref_oh = (one_hot.reshape(-1, num_actions) @ embedder.weight).reshape(
        batch, seq, embed_dim)
    np.testing.assert_allclose(np.asarray(out_oh), np.asarray(ref_oh),
                               rtol=1e-5, atol=1e-5)

    # --- dropout path (training=True): entries are 0 or scaled by 1/(1-p) ---
    embedder_do = ActionEmbedder(num_actions, embed_dim, dropout_p=0.5, key=k_w)
    out_do = embedder_do(idx, training=True, key=k_do)
    jax.block_until_ready(out_do)
    assert out_do.shape == (batch, seq, embed_dim)
    assert bool(jnp.all(jnp.isfinite(out_do)))
    scaled = 2.0 * ref_idx
    ok = (jnp.abs(out_do) < 1e-6) | (jnp.abs(out_do - scaled) < 1e-4)
    assert bool(jnp.all(ok))

    print("KERNEL_OK")
</pallas_src>

<mosaic_0001>
module attributes {stable_mosaic.version = 11 : i64} {
  func.func @_embed_kernel(%arg0: i32, %arg1: memref<16x1xi32, #tpu.memory_space<vmem>>, %arg2: memref<10x128xf32, #tpu.memory_space<vmem>>, %arg3: memref<16x128xf32, #tpu.memory_space<vmem>>) attributes {dimension_semantics = [#tpu.dimension_semantics<parallel>], iteration_bounds = array<i64: 1>, scalar_prefetch = 0 : i64, scratch_operands = 0 : i64, tpu.core_type = #tpu.core_type<tc>, window_params = [{transform_indices = @transform_0, window_bounds = array<i64: 16, 1>}, {pipeline_mode = #tpu.pipeline_mode<synchronous>, transform_indices = @transform_1, window_bounds = array<i64: 10, 128>}, {transform_indices = @transform_2, window_bounds = array<i64: 16, 128>}]} {
    %c0 = arith.constant 0 : index
    %c0_0 = arith.constant 0 : index
    %0 = vector.load %arg2[%c0, %c0_0] : memref<10x128xf32, #tpu.memory_space<vmem>>, vector<10x128xf32>
    %1 = tpu.iota {dimensions = array<i32: 1>} : vector<16x10xi32>
    %c0_1 = arith.constant 0 : index
    %c0_2 = arith.constant 0 : index
    %2 = vector.load %arg1[%c0_1, %c0_2] : memref<16x1xi32, #tpu.memory_space<vmem>>, vector<16x1xi32>
    %3 = vector.broadcast %2 : vector<16x1xi32> to vector<16x10xi32>
    %4 = arith.cmpi eq, %1, %3 : vector<16x10xi32>
    %5 = arith.extui %4 : vector<16x10xi1> to vector<16x10xi32>
    %6 = arith.sitofp %5 : vector<16x10xi32> to vector<16x10xf32>
    %cst = arith.constant dense<0.000000e+00> : vector<16x128xf32>
    %7 = tpu.matmul %6, %0, %cst {dimension_numbers = #tpu.dot_dimension_numbers<[1], [0], [0], [1], [0, 0, 1, 1], [], []>} : vector<16x10xf32>, vector<10x128xf32>, vector<16x128xf32> -> vector<16x128xf32>
    %c0_3 = arith.constant 0 : index
    %c0_4 = arith.constant 0 : index
    %8 = vector.load %arg3[%c0_3, %c0_4] : memref<16x128xf32, #tpu.memory_space<vmem>>, vector<16x128xf32>
    tpu.vector_store %arg3[%c0_3, %c0_4], %7 {strides = array<i32>} : memref<16x128xf32, #tpu.memory_space<vmem>>, vector<16x128xf32>,
    return
  }
  func.func @transform_0(%arg0: i32) -> (i32, i32) {
    %c0_i32 = arith.constant 0 : i32
    %c0_i32_0 = arith.constant 0 : i32
    return %arg0, %c0_i32 : i32, i32
  }
  func.func @transform_1(%arg0: i32) -> (i32, i32) {
    %c0_i32 = arith.constant 0 : i32
    %c0_i32_0 = arith.constant 0 : i32
    %c0_i32_1 = arith.constant 0 : i32
    return %c0_i32, %c0_i32_0 : i32, i32
  }
  func.func @transform_2(%arg0: i32) -> (i32, i32) {
    %c0_i32 = arith.constant 0 : i32
    %c0_i32_0 = arith.constant 0 : i32
    return %arg0, %c0_i32 : i32, i32
  }
}

</mosaic_0001>

<llo_original>
// kernel: tpu_custom_call.1
$region0: #{tpu_custom_call.1}
  #allocation0 [shape = 'u32[]', space=smem, size = 0x4, offset = 0x4, fixed_abs, tag = 'smem constant byte address 0x4 - core index']
  #allocation1 [shape = 'u32[144,128]{1,0:T(1,128)}', space=vmem, size = 0x12000, scoped, tag = 'internal scratch']
  %s0 = inlined_call_operand.vmem [shape: s32[16,1], index: 0, kind: input, shape index: {}]
  %s1 = inlined_call_operand.vmem [shape: f32[10,128], index: 1, kind: input, shape index: {}]
  %s2 = inlined_call_operand.hbm [shape: f32[16,128], index: 2, kind: output, shape index: {}]
  %s3 = sld [smem:[#allocation0]]
  $region18: #{tpu_custom_call.1} parent=0
    _
  %s5 = ssub.s32 1, %s3
  %s6 = scalar_select 0, %s5, %s3
  $region1: #{tpu_custom_call.1} parent=0
    #allocation2 [shape = 'u8[8192]{0}', space=vmem, size = 0x2000, scoped, tag = 'output window, operand 0, single buffered']
    #allocation3 [shape = 's32[1]{0}', space=sflag, size = 0x4, scoped, tag = 'scoped memory for tpu_custom_call.1']
    %7 = vsyncpa [#allocation3], 0
    // Predicated region
    $region2: #{tpu_custom_call.1} parent=1 // pred_check
      _
    $region3: #{tpu_custom_call.1} parent=1 // pred_check_branch
      %9 = sbr.rel (0) target = $region5
    $region4: #{tpu_custom_call.1} parent=1 // pred_region
      _
    $region5: #{tpu_custom_call.1} parent=1 // pred_fallthru
      _
    // Predicated region
    $region6: #{tpu_custom_call.1} parent=1 // pred_check
      _
    $region7: #{tpu_custom_call.1} parent=1 // pred_check_branch
      %11 = sbr.rel (0) target = $region9
    $region8: #{tpu_custom_call.1} parent=1 // pred_region
      _
    $region9: #{tpu_custom_call.1} parent=1 // pred_fallthru
      _
    %v12 = vld [vmem:[%s1] sm:$0xff]
    %v13 = vld [vmem:[%s1 + $0x8] sm:$0x3]
    %v14 = vlaneseq
    %v15 = vand.u32 %v14, 127
    %v16 = vld [vmem:[%s0] sm:$0xff]
    %v17 = vld [vmem:[%s0 + $0x8] sm:$0xff]
    %18 = vset.pattern.permute.xlu0 0
    %19 = vperm.xlu0 %18, %v16
    %v20 = vpop.permute.xlu0 %19
    %21 = vset.pattern.permute.xlu0 0
    %22 = vperm.xlu0 %21, %v17
    %v23 = vpop.permute.xlu0 %22
    %vm24 = vcmp.eq.s32.totalorder %v15, %v20
    %vm25 = vcmp.eq.s32.totalorder %v15, %v23
    %v26 = vsel %vm24, 1, 0
    %v27 = vsel %vm25, 1, 0
    %v28 = vcvt.s32.f32 %v26
    %v29 = vcvt.s32.f32 %v27
    %vm30 = vcmask 80896
    %v32 = vsel %vm30, %v28, 0
    %v35 = vsel %vm30, %v29, 0
    %vm37 = vcmask 1041408
    %v39 = vsel %vm37, %v13, 0
    %41 = vmatprep.subr.mxu0 0.0
    %42 = vmatpush1.msra.mxu0 %v12
    %43 = vmatprep.subr.mxu0 0.0
    %44 = vmatpush1.msra.mxu0 %v39
    %45 = vmatprep.subr.mxu0 0.0
    %46 = vmatpush1.msra.mxu0 0.0
    %47 = vmatprep.subr.mxu0 0.0
    %48 = vmatpush1.msra.mxu0 0.0
    %49 = vmatprep.subr.mxu0 0.0
    %50 = vmatpush1.msra.mxu0 0.0
    %51 = vmatprep.subr.mxu0 0.0
    %52 = vmatpush1.msra.mxu0 0.0
    %53 = vmatprep.subr.mxu0 0.0
    %54 = vmatpush1.msra.mxu0 0.0
    %55 = vmatprep.subr.mxu0 0.0
    %56 = vmatpush1.msra.mxu0 0.0
    %57 = vmatprep.subr.mxu0 0.0
    %58 = vmatpush1.msra.mxu0 0.0
    %59 = vmatprep.subr.mxu0 0.0
    %60 = vmatpush1.msra.mxu0 0.0
    %61 = vmatprep.subr.mxu0 0.0
    %62 = vmatpush1.msra.mxu0 0.0
    %63 = vmatprep.subr.mxu0 0.0
    %64 = vmatpush1.msra.mxu0 0.0
    %65 = vmatprep.subr.mxu0 0.0
    %66 = vmatpush1.msra.mxu0 0.0
    %67 = vmatprep.subr.mxu0 0.0
    %68 = vmatpush1.msra.mxu0 0.0
    %69 = vmatprep.subr.mxu0 0.0
    %70 = vmatpush1.msra.mxu0 0.0
    %71 = vmatprep.subr.mxu0 0.0
    %72 = vmatpush1.msra.mxu0 0.0
    %73 = vmatprep.subr.mxu0 0.0
    %74 = vmatpush1.msra.mxu0 0.0
    %75 = vmatprep.subr.mxu0 0.0
    %76 = vmatpush1.msra.mxu0 0.0
    %77 = vmatprep.subr.mxu0 0.0
    %78 = vmatpush1.msra.mxu0 0.0
    %79 = vmatprep.subr.mxu0 0.0
    %80 = vmatpush1.msra.mxu0 0.0
    %81 = vmatprep.subr.mxu0 0.0
    %82 = vmatpush1.msra.mxu0 0.0
    %83 = vmatprep.subr.mxu0 0.0
    %84 = vmatpush1.msra.mxu0 0.0
    %85 = vmatprep.subr.mxu0 0.0
    %86 = vmatpush1.msra.mxu0 0.0
    %87 = vmatprep.subr.mxu0 0.0
    %88 = vmatpush1.msra.mxu0 0.0
    %89 = vmatprep.subr.mxu0 0.0
    %90 = vmatpush1.msra.mxu0 0.0
    %91 = vmatprep.subr.mxu0 0.0
    %92 = vmatpush1.msra.mxu0 0.0
    %93 = vmatprep.subr.mxu0 0.0
    %94 = vmatpush1.msra.mxu0 0.0
    %95 = vmatprep.subr.mxu0 0.0
    %96 = vmatpush1.msra.mxu0 0.0
    %97 = vmatprep.subr.mxu0 0.0
    %98 = vmatpush1.msra.mxu0 0.0
    %99 = vmatprep.subr.mxu0 0.0
    %100 = vmatpush1.msra.mxu0 0.0
    %101 = vmatprep.subr.mxu0 0.0
    %102 = vmatpush1.msra.mxu0 0.0
    %103 = vmatprep.subr.mxu0 0.0
    %104 = vmatpush1.msra.mxu0 0.0
    %105 = vmatprep.mubr.f32.mxu0 0.0
    %106 = vmatmul.mubr.f32.gmra.mrb[0].mxu0 %v32
    %v107 = vpop.f32.mrb[0].mxu0
    %v108 = vadd.f32 0.0, %v107
    %v109 = vpop.f32.mrb[0].mxu0
    %110 = vmatprep.mubr.f32.mxu0 0.0
    %111 = vmatmul.mubr.f32.gmra.mrb[0].mxu0 %v35
    %v112 = vpop.f32.mrb[0].mxu0
    %v113 = vadd.f32 0.0, %v112
    %v114 = vpop.f32.mrb[0].mxu0
    %115 = vdwg.mxu0
    %116 = vst [vmem:[#allocation2] sm:$0xff] %v108
    %117 = vst [vmem:[#allocation2 + $0x8] sm:$0xff] %v113
    // Predicated region
    $region10: #{tpu_custom_call.1} parent=1 // pred_check
      _
    $region11: #{tpu_custom_call.1} parent=1 // pred_check_branch
      %119 = sbr.rel (0) target = $region13
    $region12: #{tpu_custom_call.1} parent=1 // pred_region
      %s121 = ssub.s32 256, 256
      %122 = vsyncadd [#allocation3], %s121
      %s123 = sshll.u32 [#allocation2], 4
      %s124 = int_to_ptr.vmem [resolvable:$true] %s123
      %129 = dma.vmem_to_hbm [thread:$0]  %s124, 256, %s2, [#allocation3], 128, 128, 8
    $region13: #{tpu_custom_call.1} parent=1 // pred_fallthru
      _
    // Predicated region
    $region14: #{tpu_custom_call.1} parent=1 // pred_check
      _
    $region15: #{tpu_custom_call.1} parent=1 // pred_check_branch
      %131 = sbr.rel (0) target = $region17
    $region16: #{tpu_custom_call.1} parent=1 // pred_region
      %132 = dma.done [#allocation3], 256
    $region17: #{tpu_custom_call.1} parent=1 // pred_fallthru
      _
    %133 = vsyncpa [#allocation3], 1

</llo_original>
